<compile_context>
chip_gen: v5e
topology: v5e:2x2
jax: 0.10.0
libtpu: 0.0.40
codegen_flags: <defaults>
</compile_context>

<pallas_src>
import functools

import jax
import jax.numpy as jnp
from jax.experimental import pallas as pl
from jax.experimental.pallas import tpu as pltpu

LANES = 128
MAX_BLOCK_ROWS = 2048      # (2048,128) f32 = 1 MiB per input buffer
NUM_SUMS = 4               # [bce_sum, intersection, sigmoid_sum, target_sum]
_PRED_PAD = -1e4           # sentinel logit: sigmoid -> 0, bce term -> 0 exactly
                           # (representable in bf16/f16 as well)


def _round_up(a, b):
    return -(-a // b) * b


@functools.lru_cache(maxsize=None)
def _num_parallel_cores():
    """2 for megacore chips (v7x / v4 / v5p), 1 for single-TC v5e / v6e."""
    try:
        kind = jax.devices()[0].device_kind.lower()
    except Exception:
        return 1
    if "lite" in kind or "v5e" in kind or "v6e" in kind:
        return 1
    if "v7" in kind or "v4" in kind or "v5p" in kind:
        return 2
    return 1


def _dice_partial_kernel(p_ref, t_ref, acc_ref, *, valid_rows, block_rows,
                         blocks_per_core, needs_edge, with_bce):
    """Accumulates per-quantity (8,128) partial sums into a core-resident
    (1, 32, 128) VMEM accumulator:
        rows  0- 7 : BCE-with-logits elementwise sum (only if with_bce)
        rows  8-15 : sigmoid(pred) * target          (intersection)
        rows 16-23 : sigmoid(pred)
        rows 24-31 : target
    """
    c = pl.program_id(0)     # core split        ("parallel")
    i = pl.program_id(1)     # reduction steps   ("arbitrary")

    @pl.when(i == 0)
    def _():
        acc_ref[...] = jnp.zeros_like(acc_ref)

    x = p_ref[...].astype(jnp.float32)    # logits
    t = t_ref[...].astype(jnp.float32)    # targets

    # One exp per element; sigmoid and the stable BCE log-term both derive
    # from e = exp(-|x|).  The divide goes to the EUP (vrcp) with one Newton
    # refinement step to recover ~f32 accuracy.
    e = jnp.exp(-jnp.abs(x))
    d = 1.0 + e
    r = pl.reciprocal(d, approx=True)
    inv = r * (2.0 - d * r)                       # Newton step: rel err ~1e-7
    s = jnp.where(x >= 0, inv, e * inv)           # sigmoid(x), numerically exact
    # BCEWithLogitsLoss elementwise: max(x,0) - x*t + log(1 + exp(-|x|))
    bce = (jnp.maximum(x, 0.0) - x * t + jnp.log1p(e)) if with_bce else None

    def red8(v):
        # (block_rows, 128) -> (8, 128): whole-vreg VPU adds, no cross-lane ops.
        return v.reshape(-1, 8, LANES).sum(axis=0)

    def accumulate(bce_v, s_v, t_v):
        if bce_v is not None:
            acc_ref[0, 0:8, :] += red8(bce_v)
        acc_ref[0, 8:16, :] += red8(s_v * t_v)
        acc_ref[0, 16:24, :] += red8(s_v)
        acc_ref[0, 24:32, :] += red8(t_v)

    if not needs_edge:
        # Every block is fully valid: no mask math at all.
        accumulate(bce, s, t)
    else:
        start_row = (c * blocks_per_core + i) * block_rows
        is_edge = start_row + block_rows > valid_rows

        @pl.when(jnp.logical_not(is_edge))
        def _():
            accumulate(bce, s, t)

        @pl.when(is_edge)
        def _():
            # Only the final block(s) pay for iota/compare/select.  The Pallas
            # edge block may contain unspecified data past `valid_rows`, so
            # mask with where (select), never multiply-by-mask (NaN-safe).
            row = jax.lax.broadcasted_iota(jnp.int32, (block_rows, LANES), 0)
            m = (row + start_row) < valid_rows
            accumulate(jnp.where(m, bce, 0.0) if with_bce else None,
                       jnp.where(m, s, 0.0),
                       jnp.where(m, t, 0.0))


def dice_loss(preds, targets, smooth=1e-6, bce=True):
    assert preds.shape[0] == targets.shape[0], \
        "predict & target batch size don't match"

    n = int(preds.size)
    ncores = _num_parallel_cores()

    # Flatten to a lane-dense (rows, 128) slab.  When n is a multiple of 128
    # (common case) this is a free reshape -- no HBM copy.  Otherwise pad by
    # < 128 elements with sentinels whose contributions are exactly zero.
    n128 = _round_up(n, LANES)
    rows = n128 // LANES
    if rows < 8:                       # tiny inputs: round rows up to one tile
        rows = 8
        n128 = rows * LANES

    def _prep(a, pad_value):
        flat = a.reshape(-1)           # keep caller dtype (f32 / bf16 / int OK)
        if n128 != n:
            flat = jnp.pad(flat, (0, n128 - n), constant_values=pad_value)
        return flat.reshape(rows, LANES)

    p2 = _prep(preds, _PRED_PAD)
    t2 = _prep(targets, 0)

    # Block sizing: largest row block (multiple of 8, <= MAX_BLOCK_ROWS) that
    # does not exceed the per-core row count; rows need NOT be a multiple of
    # the block -- the last block per core is a Pallas edge block, masked
    # in-kernel only when it exists.
    rows_per_core = -(-rows // ncores)
    block_rows = min(MAX_BLOCK_ROWS, max(8, (rows_per_core // 8) * 8))
    total_blocks = -(-rows // block_rows)
    blocks_per_core = -(-total_blocks // ncores)
    needs_edge = (ncores * blocks_per_core * block_rows != rows)
    max_block = total_blocks - 1

    in_spec = pl.BlockSpec(
        (block_rows, LANES),
        lambda c, i: (jnp.minimum(c * blocks_per_core + i, max_block), 0))
    out_spec = pl.BlockSpec((1, NUM_SUMS * 8, LANES), lambda c, i: (c, 0, 0))

    kernel = functools.partial(
        _dice_partial_kernel, valid_rows=rows, block_rows=block_rows,
        blocks_per_core=blocks_per_core, needs_edge=needs_edge,
        with_bce=bool(bce))

    partials = pl.pallas_call(
        kernel,
        out_shape=jax.ShapeDtypeStruct((ncores, NUM_SUMS * 8, LANES),
                                       jnp.float32),
        grid=(ncores, blocks_per_core),
        in_specs=[in_spec, in_spec],
        out_specs=out_spec,
        compiler_params=pltpu.CompilerParams(
            dimension_semantics=("parallel", "arbitrary"),
            vmem_limit_bytes=32 * 1024 * 1024),
    )(p2, t2)

    # Final tiny reduction (ncores * 32 * 128 floats) in plain JAX.
    sums = partials.reshape(ncores, NUM_SUMS, 8, LANES).sum(axis=(0, 2, 3))
    bce_sum, inter, p_sum, t_sum = sums[0], sums[1], sums[2], sums[3]

    loss = 1.0 - (2.0 * inter + smooth) / (p_sum + t_sum + smooth)
    if bce:
        loss = loss + bce_sum / jnp.float32(n)   # BCEWithLogitsLoss mean
    return loss


def _reference_dice_loss(preds, targets, smooth=1e-6, bce=True):
    x = preds.astype(jnp.float32).reshape(-1)
    t = targets.astype(jnp.float32).reshape(-1)
    loss = jnp.float32(0.0)
    if bce:
        bce_el = jnp.maximum(x, 0.0) - x * t + jnp.log1p(jnp.exp(-jnp.abs(x)))
        loss = loss + jnp.mean(bce_el)
    s = jax.nn.sigmoid(x)
    inter = jnp.sum(s * t)
    loss = loss + 1.0 - (2.0 * inter + smooth) / (jnp.sum(s) + jnp.sum(t) + smooth)
    return loss


if __name__ == "__main__":
    key = jax.random.PRNGKey(0)
    k1, k2, k3, k4, k5, k6 = jax.random.split(key, 6)

    # Case 1: lane-aligned size (2*4*16*16 = 2048) -> zero-copy fast path.
    p1 = jax.random.normal(k1, (2, 4, 16, 16), dtype=jnp.float32)
    t1 = (jax.random.uniform(k2, (2, 4, 16, 16)) > 0.5).astype(jnp.float32)
    out1 = jax.block_until_ready(dice_loss(p1, t1))
    ref1 = _reference_dice_loss(p1, t1)
    assert jnp.allclose(out1, ref1, rtol=2e-5, atol=2e-5), (out1, ref1)

    # Case 2: ragged size (2*3*17*19 = 1938) -> sentinel lane-padding path;
    # bf16 targets exercise the narrow target stream (kernel casts in VMEM).
    p2 = jax.random.normal(k3, (2, 3, 17, 19), dtype=jnp.float32)
    t2 = (jax.random.uniform(k4, (2, 3, 17, 19)) > 0.5).astype(jnp.bfloat16)
    out2 = jax.block_until_ready(dice_loss(p2, t2))
    ref2 = _reference_dice_loss(p2, t2)
    assert jnp.allclose(out2, ref2, rtol=2e-5, atol=2e-5), (out2, ref2)

    # Case 3: lane-aligned but rows not a block multiple (1*1*20*128 = 2560)
    # -> exercises the pl.when-gated edge-block mask (no wrapper pad at all).
    p3 = jax.random.normal(k5, (1, 1, 20, 128), dtype=jnp.float32)
    t3 = (jax.random.uniform(k6, (1, 1, 20, 128)) > 0.5).astype(jnp.float32)
    out3 = jax.block_until_ready(dice_loss(p3, t3))
    ref3 = _reference_dice_loss(p3, t3)
    assert jnp.allclose(out3, ref3, rtol=2e-5, atol=2e-5), (out3, ref3)

    # Case 4: dice-only (static bce=False path skips the BCE chain entirely).
    out4 = jax.block_until_ready(dice_loss(p1, t1, bce=False))
    ref4 = _reference_dice_loss(p1, t1, bce=False)
    assert jnp.allclose(out4, ref4, rtol=2e-5, atol=2e-5), (out4, ref4)

    print("KERNEL_OK")
</pallas_src>

<mosaic_0001>
module attributes {stable_mosaic.version = 11 : i64} {
  func.func @_dice_partial_kernel(%arg0: i32, %arg1: i32, %arg2: memref<16x128xf32, #tpu.memory_space<vmem>>, %arg3: memref<16x128xf32, #tpu.memory_space<vmem>>, %arg4: memref<1x32x128xf32, #tpu.memory_space<vmem>>) attributes {dimension_semantics = [#tpu.dimension_semantics<parallel>, #tpu.dimension_semantics<arbitrary>], iteration_bounds = array<i64: 1, 1>, scalar_prefetch = 0 : i64, scratch_operands = 0 : i64, tpu.core_type = #tpu.core_type<tc>, window_params = [{transform_indices = @transform_0, window_bounds = array<i64: 16, 128>}, {transform_indices = @transform_1, window_bounds = array<i64: 16, 128>}, {transform_indices = @transform_2, window_bounds = array<i64: 1, 32, 128>}]} {
    %c0_i32 = arith.constant 0 : i32
    %0 = arith.cmpi eq, %arg1, %c0_i32 : i32
    %1 = arith.extui %0 : i1 to i32
    %c0_i32_0 = arith.constant 0 : i32
    %2 = arith.cmpi ne, %1, %c0_i32_0 : i32
    scf.if %2 {
      %cst_33 = arith.constant 0.000000e+00 : f32
      %59 = vector.broadcast %cst_33 : f32 to vector<1x32x128xf32>
      %c0_34 = arith.constant 0 : index
      %c0_35 = arith.constant 0 : index
      %c0_36 = arith.constant 0 : index
      %60 = vector.load %arg4[%c0_34, %c0_35, %c0_36] : memref<1x32x128xf32, #tpu.memory_space<vmem>>, vector<1x32x128xf32>
      tpu.vector_store %arg4[%c0_34, %c0_35, %c0_36], %59 {strides = array<i32>} : memref<1x32x128xf32, #tpu.memory_space<vmem>>, vector<1x32x128xf32>,
    } else {
    }
    %c0 = arith.constant 0 : index
    %c0_1 = arith.constant 0 : index
    %3 = vector.load %arg2[%c0, %c0_1] : memref<16x128xf32, #tpu.memory_space<vmem>>, vector<16x128xf32>
    %c0_2 = arith.constant 0 : index
    %c0_3 = arith.constant 0 : index
    %4 = vector.load %arg3[%c0_2, %c0_3] : memref<16x128xf32, #tpu.memory_space<vmem>>, vector<16x128xf32>
    %5 = math.absf %3 : vector<16x128xf32>
    %cst = arith.constant 0.000000e+00 : f32
    %6 = vector.broadcast %cst : f32 to vector<16x128xf32>
    %7 = arith.subf %6, %5 : vector<16x128xf32>
    %8 = math.exp %7 : vector<16x128xf32>
    %cst_4 = arith.constant 1.000000e+00 : f32
    %9 = vector.broadcast %cst_4 : f32 to vector<16x128xf32>
    %10 = arith.addf %9, %8 : vector<16x128xf32>
    %11 = tpu.reciprocal %10 {approx = true} : vector<16x128xf32> -> vector<16x128xf32>
    %12 = arith.mulf %10, %11 : vector<16x128xf32>
    %cst_5 = arith.constant 2.000000e+00 : f32
    %13 = vector.broadcast %cst_5 : f32 to vector<16x128xf32>
    %14 = arith.subf %13, %12 : vector<16x128xf32>
    %15 = arith.mulf %11, %14 : vector<16x128xf32>
    %cst_6 = arith.constant 0.000000e+00 : f32
    %16 = vector.broadcast %cst_6 : f32 to vector<16x128xf32>
    %17 = arith.cmpf oge, %3, %16 : vector<16x128xf32>
    %18 = arith.mulf %8, %15 : vector<16x128xf32>
    %19 = arith.select %17, %15, %18 : vector<16x128xi1>, vector<16x128xf32>
    %cst_7 = arith.constant 0.000000e+00 : f32
    %20 = vector.broadcast %cst_7 : f32 to vector<16x128xf32>
    %21 = arith.maximumf %3, %20 : vector<16x128xf32>
    %22 = arith.mulf %3, %4 : vector<16x128xf32>
    %23 = arith.subf %21, %22 : vector<16x128xf32>
    %24 = math.log1p %8 : vector<16x128xf32>
    %25 = arith.addf %23, %24 : vector<16x128xf32>
    %c0_8 = arith.constant 0 : index
    %c0_9 = arith.constant 0 : index
    %c0_10 = arith.constant 0 : index
    %26 = vector.load %arg4[%c0_8, %c0_9, %c0_10] : memref<1x32x128xf32, #tpu.memory_space<vmem>>, vector<1x8x128xf32>
    %27 = vector.shape_cast %26 : vector<1x8x128xf32> to vector<8x128xf32>
    %28 = vector.shape_cast %25 : vector<16x128xf32> to vector<2x8x128xf32>
    %cst_11 = arith.constant dense<0.000000e+00> : vector<8x128xf32>
    %29 = vector.multi_reduction <add>, %28, %cst_11 [0] : vector<2x8x128xf32> to vector<8x128xf32>
    %30 = arith.addf %27, %29 : vector<8x128xf32>
    %c0_12 = arith.constant 0 : index
    %c0_13 = arith.constant 0 : index
    %c0_14 = arith.constant 0 : index
    %31 = vector.load %arg4[%c0_12, %c0_13, %c0_14] : memref<1x32x128xf32, #tpu.memory_space<vmem>>, vector<1x8x128xf32>
    %32 = vector.shape_cast %31 : vector<1x8x128xf32> to vector<8x128xf32>
    %33 = vector.shape_cast %30 : vector<8x128xf32> to vector<1x8x128xf32>
    tpu.vector_store %arg4[%c0_12, %c0_13, %c0_14], %33 {strides = array<i32>} : memref<1x32x128xf32, #tpu.memory_space<vmem>>, vector<1x8x128xf32>,
    %c0_15 = arith.constant 0 : index
    %c8 = arith.constant 8 : index
    %c0_16 = arith.constant 0 : index
    %34 = vector.load %arg4[%c0_15, %c8, %c0_16] : memref<1x32x128xf32, #tpu.memory_space<vmem>>, vector<1x8x128xf32>
    %35 = vector.shape_cast %34 : vector<1x8x128xf32> to vector<8x128xf32>
    %36 = arith.mulf %19, %4 : vector<16x128xf32>
    %37 = vector.shape_cast %36 : vector<16x128xf32> to vector<2x8x128xf32>
    %cst_17 = arith.constant dense<0.000000e+00> : vector<8x128xf32>
    %38 = vector.multi_reduction <add>, %37, %cst_17 [0] : vector<2x8x128xf32> to vector<8x128xf32>
    %39 = arith.addf %35, %38 : vector<8x128xf32>
    %c0_18 = arith.constant 0 : index
    %c8_19 = arith.constant 8 : index
    %c0_20 = arith.constant 0 : index
    %40 = vector.load %arg4[%c0_18, %c8_19, %c0_20] : memref<1x32x128xf32, #tpu.memory_space<vmem>>, vector<1x8x128xf32>
    %41 = vector.shape_cast %40 : vector<1x8x128xf32> to vector<8x128xf32>
    %42 = vector.shape_cast %39 : vector<8x128xf32> to vector<1x8x128xf32>
    tpu.vector_store %arg4[%c0_18, %c8_19, %c0_20], %42 {strides = array<i32>} : memref<1x32x128xf32, #tpu.memory_space<vmem>>, vector<1x8x128xf32>,
    %c0_21 = arith.constant 0 : index
    %c16 = arith.constant 16 : index
    %c0_22 = arith.constant 0 : index
    %43 = vector.load %arg4[%c0_21, %c16, %c0_22] : memref<1x32x128xf32, #tpu.memory_space<vmem>>, vector<1x8x128xf32>
    %44 = vector.shape_cast %43 : vector<1x8x128xf32> to vector<8x128xf32>
    %45 = vector.shape_cast %19 : vector<16x128xf32> to vector<2x8x128xf32>
    %cst_23 = arith.constant dense<0.000000e+00> : vector<8x128xf32>
    %46 = vector.multi_reduction <add>, %45, %cst_23 [0] : vector<2x8x128xf32> to vector<8x128xf32>
    %47 = arith.addf %44, %46 : vector<8x128xf32>
    %c0_24 = arith.constant 0 : index
    %c16_25 = arith.constant 16 : index
    %c0_26 = arith.constant 0 : index
    %48 = vector.load %arg4[%c0_24, %c16_25, %c0_26] : memref<1x32x128xf32, #tpu.memory_space<vmem>>, vector<1x8x128xf32>
    %49 = vector.shape_cast %48 : vector<1x8x128xf32> to vector<8x128xf32>
    %50 = vector.shape_cast %47 : vector<8x128xf32> to vector<1x8x128xf32>
    tpu.vector_store %arg4[%c0_24, %c16_25, %c0_26], %50 {strides = array<i32>} : memref<1x32x128xf32, #tpu.memory_space<vmem>>, vector<1x8x128xf32>,
    %c0_27 = arith.constant 0 : index
    %c24 = arith.constant 24 : index
    %c0_28 = arith.constant 0 : index
    %51 = vector.load %arg4[%c0_27, %c24, %c0_28] : memref<1x32x128xf32, #tpu.memory_space<vmem>>, vector<1x8x128xf32>
    %52 = vector.shape_cast %51 : vector<1x8x128xf32> to vector<8x128xf32>
    %53 = vector.shape_cast %4 : vector<16x128xf32> to vector<2x8x128xf32>
    %cst_29 = arith.constant dense<0.000000e+00> : vector<8x128xf32>
    %54 = vector.multi_reduction <add>, %53, %cst_29 [0] : vector<2x8x128xf32> to vector<8x128xf32>
    %55 = arith.addf %52, %54 : vector<8x128xf32>
    %c0_30 = arith.constant 0 : index
    %c24_31 = arith.constant 24 : index
    %c0_32 = arith.constant 0 : index
    %56 = vector.load %arg4[%c0_30, %c24_31, %c0_32] : memref<1x32x128xf32, #tpu.memory_space<vmem>>, vector<1x8x128xf32>
    %57 = vector.shape_cast %56 : vector<1x8x128xf32> to vector<8x128xf32>
    %58 = vector.shape_cast %55 : vector<8x128xf32> to vector<1x8x128xf32>
    tpu.vector_store %arg4[%c0_30, %c24_31, %c0_32], %58 {strides = array<i32>} : memref<1x32x128xf32, #tpu.memory_space<vmem>>, vector<1x8x128xf32>,
    return
  }
  func.func @transform_0(%arg0: i32, %arg1: i32) -> (i32, i32) {
    %c1_i32 = arith.constant 1 : i32
    %0 = arith.muli %arg0, %c1_i32 : i32
    %1 = arith.addi %0, %arg1 : i32
    %c0_i32 = arith.constant 0 : i32
    %2 = arith.minsi %1, %c0_i32 : i32
    %c0_i32_0 = arith.constant 0 : i32
    %c0_i32_1 = arith.constant 0 : i32
    return %2, %c0_i32_0 : i32, i32
  }
  func.func @transform_1(%arg0: i32, %arg1: i32) -> (i32, i32) {
    %c1_i32 = arith.constant 1 : i32
    %0 = arith.muli %arg0, %c1_i32 : i32
    %1 = arith.addi %0, %arg1 : i32
    %c0_i32 = arith.constant 0 : i32
    %2 = arith.minsi %1, %c0_i32 : i32
    %c0_i32_0 = arith.constant 0 : i32
    %c0_i32_1 = arith.constant 0 : i32
    return %2, %c0_i32_0 : i32, i32
  }
  func.func @transform_2(%arg0: i32, %arg1: i32) -> (i32, i32, i32) {
    %c0_i32 = arith.constant 0 : i32
    %c0_i32_0 = arith.constant 0 : i32
    %c0_i32_1 = arith.constant 0 : i32
    return %arg0, %c0_i32, %c0_i32_0 : i32, i32, i32
  }
}

</mosaic_0001>

<llo_original>
// kernel: tpu_custom_call.1
$region0: #{tpu_custom_call.1}
  #allocation0 [shape = 'u32[]', space=smem, size = 0x4, offset = 0x4, fixed_abs, tag = 'smem constant byte address 0x4 - core index']
  #allocation1 [shape = 'u32[72,128]{1,0:T(1,128)}', space=vmem, size = 0x9000, scoped, tag = 'internal scratch']
  %s0 = inlined_call_operand.hbm [shape: f32[16,128], index: 0, kind: input, shape index: {}]
  %s1 = inlined_call_operand.hbm [shape: f32[16,128], index: 1, kind: input, shape index: {}]
  %s2 = inlined_call_operand.hbm [shape: f32[1,32,128], index: 2, kind: output, shape index: {}]
  %s3 = sld [smem:[#allocation0]]
  $region30: #{tpu_custom_call.1} parent=0
    _
  %s5 = ssub.s32 1, %s3
  %s6 = scalar_select 0, %s5, %s3
  $region1: #{tpu_custom_call.1} parent=0
    #allocation2 [shape = 'u8[8192]{0}', space=vmem, size = 0x2000, scoped, tag = 'input window, operand 0, single buffered']
    #allocation3 [shape = 's32[1]{0}', space=sflag, size = 0x4, scoped, tag = 'scoped memory for tpu_custom_call.1']
    #allocation4 [shape = 's32[1]{0}', space=sflag, size = 0x4, scoped, tag = 'scoped memory for tpu_custom_call.1']
    #allocation5 [shape = 'u8[8192]{0}', space=vmem, size = 0x2000, scoped, tag = 'input window, operand 1, single buffered']
    #allocation6 [shape = 's32[1]{0}', space=sflag, size = 0x4, scoped, tag = 'scoped memory for tpu_custom_call.1']
    #allocation7 [shape = 'u8[16384]{0}', space=vmem, size = 0x4000, scoped, tag = 'output window, operand 0, single buffered']
    %7 = vsyncpa [#allocation3], 0
    %8 = vsyncpa [#allocation6], 0
    %9 = vsyncpa [#allocation4], 0
    // Predicated region
    $region2: #{tpu_custom_call.1} parent=1 // pred_check
      _
    $region3: #{tpu_custom_call.1} parent=1 // pred_check_branch
      %11 = sbr.rel (0) target = $region5
    $region4: #{tpu_custom_call.1} parent=1 // pred_region
      %s12 = sadd.s32 0, 0
      %p13 = scmp.lt.s32.totalorder %s12, 0
      %s14 = scalar_select %p13, %s12, 0
      %s15 = smul.u32 2, %s14
      %17 = vsyncadd [#allocation3], 0
      %s18 = smul.addr %s15, 8
      %s19 = scalar_lea.hbm %s0, %s18
      %s20 = sshll.u32 %s19, 4
      %s21 = int_to_ptr.hbm [resolvable:$true] %s20
      %s22 = sshll.u32 [#allocation2], 4
      %s23 = int_to_ptr.vmem [resolvable:$true] %s22
      %28 = dma.hbm_to_vmem [thread:$0]  %s21, 256, %s23, [#allocation3], 128, 128, 8
    $region5: #{tpu_custom_call.1} parent=1 // pred_fallthru
      _
    // Predicated region
    $region6: #{tpu_custom_call.1} parent=1 // pred_check
      _
    $region7: #{tpu_custom_call.1} parent=1 // pred_check_branch
      %30 = sbr.rel (0) target = $region9
    $region8: #{tpu_custom_call.1} parent=1 // pred_region
      %s31 = sadd.s32 0, 0
      %p32 = scmp.lt.s32.totalorder %s31, 0
      %s33 = scalar_select %p32, %s31, 0
      %s34 = smul.u32 2, %s33
      %36 = vsyncadd [#allocation6], 0
      %s37 = smul.addr %s34, 8
      %s38 = scalar_lea.hbm %s1, %s37
      %s39 = sshll.u32 %s38, 4
      %s40 = int_to_ptr.hbm [resolvable:$true] %s39
      %s41 = sshll.u32 [#allocation5], 4
      %s42 = int_to_ptr.vmem [resolvable:$true] %s41
      %47 = dma.hbm_to_vmem [thread:$0]  %s40, 256, %s42, [#allocation6], 128, 128, 8
    $region9: #{tpu_custom_call.1} parent=1 // pred_fallthru
      _
    // Predicated region
    $region10: #{tpu_custom_call.1} parent=1 // pred_check
      _
    $region11: #{tpu_custom_call.1} parent=1 // pred_check_branch
      %49 = sbr.rel (0) target = $region13
    $region12: #{tpu_custom_call.1} parent=1 // pred_region
      %51 = dma.done [#allocation3], 256
    $region13: #{tpu_custom_call.1} parent=1 // pred_fallthru
      _
    // Predicated region
    $region14: #{tpu_custom_call.1} parent=1 // pred_check
      _
    $region15: #{tpu_custom_call.1} parent=1 // pred_check_branch
      %53 = sbr.rel (0) target = $region17
    $region16: #{tpu_custom_call.1} parent=1 // pred_region
      %55 = dma.done [#allocation6], 256
    $region17: #{tpu_custom_call.1} parent=1 // pred_fallthru
      _
    %s56 = sadd.s32 0, 0
    %p57 = scmp.lt.s32.totalorder %s56, 0
    %s58 = scalar_select %p57, %s56, 0
    %s59 = smul.u32 2, %s58
    %s60 = sadd.s32 0, 0
    %p61 = scmp.lt.s32.totalorder %s60, 0
    %s62 = scalar_select %p61, %s60, 0
    %s63 = smul.u32 2, %s62
    %p64 = scmp.eq.s32.totalorder 0, 0
    // Predicated region
    $region18: #{tpu_custom_call.1} parent=1 // pred_check
      %p65 = pneg %p64
    $region19: #{tpu_custom_call.1} parent=1 // pred_check_branch
      %67 = sbr.rel (%p65) target = $region21
    $region20: #{tpu_custom_call.1} parent=1 // pred_region
      %68 = vst [vmem:[#allocation7] sm:$0xff] 0.0
      %69 = vst [vmem:[#allocation7 + $0x8] sm:$0xff] 0.0
      %70 = vst [vmem:[#allocation7 + $0x10] sm:$0xff] 0.0
      %71 = vst [vmem:[#allocation7 + $0x18] sm:$0xff] 0.0
    $region21: #{tpu_custom_call.1} parent=1 // pred_fallthru
      _
    %v72 = vld [vmem:[#allocation2] sm:$0xff]
    %v73 = vld [vmem:[#allocation2 + $0x8] sm:$0xff]
    %v74 = vld [vmem:[#allocation5] sm:$0xff]
    %v75 = vld [vmem:[#allocation5 + $0x8] sm:$0xff]
    %v76 = vand.u32 2147483647, %v72
    %v77 = vand.u32 2147483647, %v73
    %v78 = vsub.f32 0.0, %v76
    %v79 = vsub.f32 0.0, %v77
    %v80 = vmul.f32 %v78, 1.442695
    %v81 = vpow.pop %v80
    %v82 = vmul.f32 %v79, 1.442695
    %v83 = vpow.pop %v82
    %v84 = vadd.f32 %v81, 1.0
    %v85 = vadd.f32 %v83, 1.0
    %v86 = vrcp.pop %v84
    %v87 = vrcp.pop %v85
    %v88 = vmul.f32 %v84, %v86
    %v89 = vmul.f32 %v85, %v87
    %v90 = vsub.f32 2.0, %v88
    %v91 = vsub.f32 2.0, %v89
    %v92 = vmul.f32 %v86, %v90
    %v93 = vmul.f32 %v87, %v91
    %vm94 = vcmp.ge.f32.partialorder %v72, 0.0
    %vm95 = vcmp.ge.f32.partialorder %v73, 0.0
    %v96 = vmul.f32 %v81, %v92
    %v97 = vmul.f32 %v83, %v93
    %v98 = vsel %vm94, %v92, %v96
    %v99 = vsel %vm95, %v93, %v97
    %v100 = vmax.f32 %v72, 0.0
    %v101 = vmax.f32 %v73, 0.0
    %v102 = vmul.f32 %v72, %v74
    %v103 = vmul.f32 %v73, %v75
    %v104 = vsub.f32 %v100, %v102
    %v105 = vsub.f32 %v101, %v103
    %v106 = vadd.f32 %v81, 1.0
    %v107 = vlog2.pop %v106
    %v108 = vmul.f32 %v107, 0.6931472
    %v109 = vmul.f32 -0.5, %v81
    %v110 = vadd.f32 %v109, 1.0
    %v111 = vmul.f32 %v110, %v81
    %v112 = vand.u32 2147483647, %v81
    %vm113 = vcmp.lt.f32.partialorder %v112, 0.0004427343
    %v114 = vsel %vm113, %v111, %v108
    %v115 = vadd.f32 %v83, 1.0
    %v116 = vlog2.pop %v115
    %v117 = vmul.f32 %v116, 0.6931472
    %v118 = vmul.f32 -0.5, %v83
    %v119 = vadd.f32 %v118, 1.0
    %v120 = vmul.f32 %v119, %v83
    %v121 = vand.u32 2147483647, %v83
    %vm122 = vcmp.lt.f32.partialorder %v121, 0.0004427343
    %v123 = vsel %vm122, %v120, %v117
    %v124 = vadd.f32 %v104, %v114
    %v125 = vadd.f32 %v105, %v123
    %v126 = vld [vmem:[#allocation7] sm:$0xff]
    %v127 = vadd.f32 %v124, %v125
    %v128 = vadd.f32 %v126, %v127
    %129 = vst [vmem:[#allocation7] sm:$0xff] %v128
    %v130 = vld [vmem:[#allocation7 + $0x8] sm:$0xff]
    %v131 = vmul.f32 %v98, %v74
    %v132 = vmul.f32 %v99, %v75
    %v133 = vadd.f32 %v131, %v132
    %v134 = vadd.f32 %v130, %v133
    %135 = vst [vmem:[#allocation7 + $0x8] sm:$0xff] %v134
    %v136 = vld [vmem:[#allocation7 + $0x10] sm:$0xff]
    %v137 = vadd.f32 %v98, %v99
    %v138 = vadd.f32 %v136, %v137
    %139 = vst [vmem:[#allocation7 + $0x10] sm:$0xff] %v138
    %v140 = vld [vmem:[#allocation7 + $0x18] sm:$0xff]
    %v141 = vadd.f32 %v74, %v75
    %v142 = vadd.f32 %v140, %v141
    %143 = vst [vmem:[#allocation7 + $0x18] sm:$0xff] %v142
    // Predicated region
    $region22: #{tpu_custom_call.1} parent=1 // pred_check
      _
    $region23: #{tpu_custom_call.1} parent=1 // pred_check_branch
      %145 = sbr.rel (0) target = $region25
    $region24: #{tpu_custom_call.1} parent=1 // pred_region
      %147 = vsyncadd [#allocation4], 0
      %s148 = sshll.u32 [#allocation7], 4
      %s149 = int_to_ptr.vmem [resolvable:$true] %s148
      %s150 = sshll.u32 %s2, 4
      %s151 = int_to_ptr.hbm [resolvable:$true] %s150
      %156 = dma.vmem_to_hbm [thread:$0]  %s149, 512, %s151, [#allocation4], 128, 128, 8
    $region25: #{tpu_custom_call.1} parent=1 // pred_fallthru
      _
    // Predicated region
    $region26: #{tpu_custom_call.1} parent=1 // pred_check
      _
    $region27: #{tpu_custom_call.1} parent=1 // pred_check_branch
      %158 = sbr.rel (0) target = $region29
    $region28: #{tpu_custom_call.1} parent=1 // pred_region
      %160 = dma.done [#allocation4], 512
    $region29: #{tpu_custom_call.1} parent=1 // pred_fallthru
      _
    %161 = vsyncpa [#allocation3], 1
    %162 = vsyncpa [#allocation6], 1
    %163 = vsyncpa [#allocation4], 1

</llo_original>
